<compile_context>
chip_gen: v7x
topology: tpu7x:2x2x1
jax: 0.10.0
libtpu: 0.0.40
codegen_flags: <defaults>
</compile_context>

<pallas_src>
import functools

import jax
import jax.numpy as jnp
from jax.experimental import pallas as pl
from jax.experimental.pallas import tpu as pltpu


def _round_up(x, m):
    return ((x + m - 1) // m) * m


def _embeddings_kernel(ids_ref, pos_ids_ref, wtab_ref, ptab_ref,
                       gamma_ref, beta_ref, o_ref, *, eps):
    """One grid step: TM token rows -> embeddings + LayerNorm."""
    tm = o_ref.shape[0]
    vocab = wtab_ref.shape[0]
    n_pos = ptab_ref.shape[0]

    ids = ids_ref[...]        # (tm, 1) int32 token ids
    pids = pos_ids_ref[...]   # (tm, 1) int32 position ids

    # Gather-as-matmul: one-hot rows hit the MXU, accumulate in f32.
    w_oh = (jax.lax.broadcasted_iota(jnp.int32, (tm, vocab), 1)
            == ids).astype(wtab_ref.dtype)
    p_oh = (jax.lax.broadcasted_iota(jnp.int32, (tm, n_pos), 1)
            == pids).astype(ptab_ref.dtype)

    x = jnp.dot(w_oh, wtab_ref[...], preferred_element_type=jnp.float32)
    x = x + jnp.dot(p_oh, ptab_ref[...], preferred_element_type=jnp.float32)

    # LayerNorm over the feature axis (matches the custom LayerNorm module).
    u = jnp.mean(x, axis=-1, keepdims=True)
    d = x - u
    s = jnp.mean(d * d, axis=-1, keepdims=True)
    xn = d * jax.lax.rsqrt(s + eps)          # rsqrt -> EUP slot
    y = gamma_ref[...] * xn + beta_ref[...]

    # Dropout in eval/inference mode is the identity (no masking, no scaling).
    o_ref[...] = y.astype(o_ref.dtype)


def embeddings_forward(input_ids, word_table, pos_table, gamma, beta,
                       eps=1e-12, block_rows=256):
    """input_ids: (B, S) int   word_table: (V, H)   pos_table: (P, H)
       gamma/beta: (H,)        returns (B, S, H)"""
    B, S = input_ids.shape
    V, H = word_table.shape
    P = pos_table.shape[0]
    M = B * S

    ids = input_ids.reshape(M).astype(jnp.int32)
    pos_ids = jnp.tile(jnp.arange(S, dtype=jnp.int32), B)   # row-major (B, S)

    # Row tile: multiple of 8 sublanes; pad M so the grid divides evenly.
    tm = min(block_rows, _round_up(M, 8))
    Mp = _round_up(M, tm)
    pad = Mp - M
    if pad:
        ids = jnp.pad(ids, (0, pad))          # pad with valid index 0
        pos_ids = jnp.pad(pos_ids, (0, pad))

    ids2 = ids.reshape(Mp, 1)
    pids2 = pos_ids.reshape(Mp, 1)
    g2 = gamma.reshape(1, H)
    b2 = beta.reshape(1, H)

    kernel = functools.partial(_embeddings_kernel, eps=eps)

    cost = pl.CostEstimate(
        flops=2 * Mp * (V + P) * H,
        transcendentals=Mp,
        bytes_accessed=4 * (V * H + P * H + Mp * H + 2 * Mp + 2 * H),
    )

    out = pl.pallas_call(
        kernel,
        out_shape=jax.ShapeDtypeStruct((Mp, H), word_table.dtype),
        grid_spec=pltpu.PrefetchScalarGridSpec(
            num_scalar_prefetch=0,
            grid=(Mp // tm,),
            in_specs=[
                pl.BlockSpec((tm, 1), lambda i: (i, 0)),   # token ids (tiled)
                pl.BlockSpec((tm, 1), lambda i: (i, 0)),   # position ids (tiled)
                pl.BlockSpec((V, H), lambda i: (0, 0)),    # word table (resident)
                pl.BlockSpec((P, H), lambda i: (0, 0)),    # pos table (resident)
                pl.BlockSpec((1, H), lambda i: (0, 0)),    # gamma (resident)
                pl.BlockSpec((1, H), lambda i: (0, 0)),    # beta (resident)
            ],
            out_specs=pl.BlockSpec((tm, H), lambda i: (i, 0)),
        ),
        compiler_params=pltpu.CompilerParams(
            dimension_semantics=("parallel",)),
        cost_estimate=cost,
    )(ids2, pids2, word_table, pos_table, g2, b2)

    return out[:M].reshape(B, S, H)


def reference_forward(input_ids, word_table, pos_table, gamma, beta, eps=1e-12):
    B, S = input_ids.shape
    words = word_table[input_ids]                      # (B, S, H)
    pos = pos_table[jnp.arange(S)][None, :, :]         # (1, S, H)
    x = words + pos
    u = jnp.mean(x, axis=-1, keepdims=True)
    s = jnp.mean((x - u) ** 2, axis=-1, keepdims=True)
    xn = (x - u) / jnp.sqrt(s + eps)
    return gamma * xn + beta                           # dropout eval = identity


if __name__ == "__main__":
    # Small shapes implied by the module: (batch, seq) token ids, hidden lane-dense.
    batch, seq = 2, 8
    hidden_size = 128
    max_drug_len = 16
    substructure_size = 64

    key = jax.random.PRNGKey(0)
    k_ids, k_w, k_p, k_g, k_b = jax.random.split(key, 5)

    input_ids = jax.random.randint(k_ids, (batch, seq), 0, substructure_size,
                                   dtype=jnp.int32)

    # nn.Embedding default init ~ N(0, 1); LayerNorm gamma=1, beta=0 (perturbed
    # slightly so the affine path is actually exercised).
    word_table = jax.random.normal(k_w, (substructure_size, hidden_size),
                                   dtype=jnp.float32)
    pos_table = jax.random.normal(k_p, (max_drug_len, hidden_size),
                                  dtype=jnp.float32)
    gamma = jnp.ones((hidden_size,), jnp.float32) + \
        0.01 * jax.random.normal(k_g, (hidden_size,), dtype=jnp.float32)
    beta = 0.01 * jax.random.normal(k_b, (hidden_size,), dtype=jnp.float32)

    out = embeddings_forward(input_ids, word_table, pos_table, gamma, beta)
    out = jax.block_until_ready(out)

    ref = reference_forward(input_ids, word_table, pos_table, gamma, beta)
    assert out.shape == (batch, seq, hidden_size)
    assert jnp.allclose(out, ref, atol=1e-5, rtol=1e-5), "mismatch vs reference"

    print("KERNEL_OK")
</pallas_src>

<mosaic_0001>
module attributes {stable_mosaic.version = 11 : i64} {
  func.func @_embeddings_kernel(%arg0: i32, %arg1: memref<16x1xi32, #tpu.memory_space<vmem>>, %arg2: memref<16x1xi32, #tpu.memory_space<vmem>>, %arg3: memref<64x128xf32, #tpu.memory_space<vmem>>, %arg4: memref<16x128xf32, #tpu.memory_space<vmem>>, %arg5: memref<1x128xf32, #tpu.memory_space<vmem>>, %arg6: memref<1x128xf32, #tpu.memory_space<vmem>>, %arg7: memref<16x128xf32, #tpu.memory_space<vmem>>) attributes {dimension_semantics = [#tpu.dimension_semantics<parallel>], iteration_bounds = array<i64: 1>, scalar_prefetch = 0 : i64, scratch_operands = 0 : i64, tpu.core_type = #tpu.core_type<tc>, window_params = [{transform_indices = @transform_0, window_bounds = array<i64: 16, 1>}, {transform_indices = @transform_1, window_bounds = array<i64: 16, 1>}, {pipeline_mode = #tpu.pipeline_mode<synchronous>, transform_indices = @transform_2, window_bounds = array<i64: 64, 128>}, {pipeline_mode = #tpu.pipeline_mode<synchronous>, transform_indices = @transform_3, window_bounds = array<i64: 16, 128>}, {pipeline_mode = #tpu.pipeline_mode<synchronous>, transform_indices = @transform_4, window_bounds = array<i64: 1, 128>}, {pipeline_mode = #tpu.pipeline_mode<synchronous>, transform_indices = @transform_5, window_bounds = array<i64: 1, 128>}, {transform_indices = @transform_6, window_bounds = array<i64: 16, 128>}]} {
    %c0 = arith.constant 0 : index
    %c0_0 = arith.constant 0 : index
    %0 = vector.load %arg1[%c0, %c0_0] : memref<16x1xi32, #tpu.memory_space<vmem>>, vector<16x1xi32>
    %c0_1 = arith.constant 0 : index
    %c0_2 = arith.constant 0 : index
    %1 = vector.load %arg2[%c0_1, %c0_2] : memref<16x1xi32, #tpu.memory_space<vmem>>, vector<16x1xi32>
    %2 = tpu.iota {dimensions = array<i32: 1>} : vector<16x64xi32>
    %3 = vector.broadcast %0 : vector<16x1xi32> to vector<16x64xi32>
    %4 = arith.cmpi eq, %2, %3 : vector<16x64xi32>
    %5 = arith.extui %4 : vector<16x64xi1> to vector<16x64xi32>
    %6 = arith.sitofp %5 : vector<16x64xi32> to vector<16x64xf32>
    %7 = tpu.iota {dimensions = array<i32: 1>} : vector<16x16xi32>
    %8 = vector.broadcast %1 : vector<16x1xi32> to vector<16x16xi32>
    %9 = arith.cmpi eq, %7, %8 : vector<16x16xi32>
    %10 = arith.extui %9 : vector<16x16xi1> to vector<16x16xi32>
    %11 = arith.sitofp %10 : vector<16x16xi32> to vector<16x16xf32>
    %c0_3 = arith.constant 0 : index
    %c0_4 = arith.constant 0 : index
    %12 = vector.load %arg3[%c0_3, %c0_4] : memref<64x128xf32, #tpu.memory_space<vmem>>, vector<64x128xf32>
    %cst = arith.constant dense<0.000000e+00> : vector<16x128xf32>
    %13 = tpu.matmul %6, %12, %cst {dimension_numbers = #tpu.dot_dimension_numbers<[1], [0], [0], [1], [0, 0, 1, 1], [], []>} : vector<16x64xf32>, vector<64x128xf32>, vector<16x128xf32> -> vector<16x128xf32>
    %c0_5 = arith.constant 0 : index
    %c0_6 = arith.constant 0 : index
    %14 = vector.load %arg4[%c0_5, %c0_6] : memref<16x128xf32, #tpu.memory_space<vmem>>, vector<16x128xf32>
    %cst_7 = arith.constant dense<0.000000e+00> : vector<16x128xf32>
    %15 = tpu.matmul %11, %14, %cst_7 {dimension_numbers = #tpu.dot_dimension_numbers<[1], [0], [0], [1], [0, 0, 1, 1], [], []>} : vector<16x16xf32>, vector<16x128xf32>, vector<16x128xf32> -> vector<16x128xf32>
    %16 = arith.addf %13, %15 : vector<16x128xf32>
    %cst_8 = arith.constant dense<0.000000e+00> : vector<16xf32>
    %17 = vector.multi_reduction <add>, %16, %cst_8 [1] : vector<16x128xf32> to vector<16xf32>
    %18 = vector.shape_cast %17 : vector<16xf32> to vector<16x1xf32>
    %cst_9 = arith.constant 1.280000e+02 : f32
    %19 = vector.broadcast %cst_9 : f32 to vector<16x1xf32>
    %20 = arith.divf %18, %19 : vector<16x1xf32>
    %21 = vector.broadcast %20 : vector<16x1xf32> to vector<16x128xf32>
    %22 = arith.subf %16, %21 : vector<16x128xf32>
    %23 = arith.mulf %22, %22 : vector<16x128xf32>
    %cst_10 = arith.constant dense<0.000000e+00> : vector<16xf32>
    %24 = vector.multi_reduction <add>, %23, %cst_10 [1] : vector<16x128xf32> to vector<16xf32>
    %25 = vector.shape_cast %24 : vector<16xf32> to vector<16x1xf32>
    %cst_11 = arith.constant 1.280000e+02 : f32
    %26 = vector.broadcast %cst_11 : f32 to vector<16x1xf32>
    %27 = arith.divf %25, %26 : vector<16x1xf32>
    %cst_12 = arith.constant 9.99999996E-13 : f32
    %28 = vector.broadcast %cst_12 : f32 to vector<16x1xf32>
    %29 = arith.addf %27, %28 : vector<16x1xf32>
    %30 = math.rsqrt %29 : vector<16x1xf32>
    %31 = vector.broadcast %30 : vector<16x1xf32> to vector<16x128xf32>
    %32 = arith.mulf %22, %31 : vector<16x128xf32>
    %c0_13 = arith.constant 0 : index
    %c0_14 = arith.constant 0 : index
    %33 = vector.load %arg5[%c0_13, %c0_14] : memref<1x128xf32, #tpu.memory_space<vmem>>, vector<1x128xf32>
    %34 = vector.broadcast %33 : vector<1x128xf32> to vector<16x128xf32>
    %35 = arith.mulf %34, %32 : vector<16x128xf32>
    %c0_15 = arith.constant 0 : index
    %c0_16 = arith.constant 0 : index
    %36 = vector.load %arg6[%c0_15, %c0_16] : memref<1x128xf32, #tpu.memory_space<vmem>>, vector<1x128xf32>
    %37 = vector.broadcast %36 : vector<1x128xf32> to vector<16x128xf32>
    %38 = arith.addf %35, %37 : vector<16x128xf32>
    %c0_17 = arith.constant 0 : index
    %c0_18 = arith.constant 0 : index
    %39 = vector.load %arg7[%c0_17, %c0_18] : memref<16x128xf32, #tpu.memory_space<vmem>>, vector<16x128xf32>
    tpu.vector_store %arg7[%c0_17, %c0_18], %38 {strides = array<i32>} : memref<16x128xf32, #tpu.memory_space<vmem>>, vector<16x128xf32>,
    return
  }
  func.func @transform_0(%arg0: i32) -> (i32, i32) {
    %c0_i32 = arith.constant 0 : i32
    %c0_i32_0 = arith.constant 0 : i32
    return %arg0, %c0_i32 : i32, i32
  }
  func.func @transform_1(%arg0: i32) -> (i32, i32) {
    %c0_i32 = arith.constant 0 : i32
    %c0_i32_0 = arith.constant 0 : i32
    return %arg0, %c0_i32 : i32, i32
  }
  func.func @transform_2(%arg0: i32) -> (i32, i32) {
    %c0_i32 = arith.constant 0 : i32
    %c0_i32_0 = arith.constant 0 : i32
    %c0_i32_1 = arith.constant 0 : i32
    return %c0_i32, %c0_i32_0 : i32, i32
  }
  func.func @transform_3(%arg0: i32) -> (i32, i32) {
    %c0_i32 = arith.constant 0 : i32
    %c0_i32_0 = arith.constant 0 : i32
    %c0_i32_1 = arith.constant 0 : i32
    return %c0_i32, %c0_i32_0 : i32, i32
  }
  func.func @transform_4(%arg0: i32) -> (i32, i32) {
    %c0_i32 = arith.constant 0 : i32
    %c0_i32_0 = arith.constant 0 : i32
    %c0_i32_1 = arith.constant 0 : i32
    return %c0_i32, %c0_i32_0 : i32, i32
  }
  func.func @transform_5(%arg0: i32) -> (i32, i32) {
    %c0_i32 = arith.constant 0 : i32
    %c0_i32_0 = arith.constant 0 : i32
    %c0_i32_1 = arith.constant 0 : i32
    return %c0_i32, %c0_i32_0 : i32, i32
  }
  func.func @transform_6(%arg0: i32) -> (i32, i32) {
    %c0_i32 = arith.constant 0 : i32
    %c0_i32_0 = arith.constant 0 : i32
    return %arg0, %c0_i32 : i32, i32
  }
}

</mosaic_0001>

<llo_original>
// kernel: tpu_custom_call.1
$region0: #{tpu_custom_call.1}
  #allocation0 [shape = 'u32[]', space=smem, size = 0x4, offset = 0x4, fixed_abs, tag = 'smem constant byte address 0x4 - core index']
  #allocation1 [shape = 'u32[144,128]{1,0:T(1,128)}', space=vmem, size = 0x12000, scoped, tag = 'internal scratch']
  %s0 = inlined_call_operand.vmem [shape: s32[16,1], index: 0, kind: input, shape index: {}]
  %s1 = inlined_call_operand.vmem [shape: s32[16,1], index: 1, kind: input, shape index: {}]
  %s2 = inlined_call_operand.hbm [shape: f32[64,128], index: 2, kind: input, shape index: {}]
  %s3 = inlined_call_operand.vmem [shape: f32[16,128], index: 3, kind: input, shape index: {}]
  %s4 = inlined_call_operand.vmem [shape: f32[1,128], index: 4, kind: input, shape index: {}]
  %s5 = inlined_call_operand.vmem [shape: f32[1,128], index: 5, kind: input, shape index: {}]
  %s6 = inlined_call_operand.hbm [shape: f32[16,128], index: 6, kind: output, shape index: {}]
  %s7 = sld [smem:[#allocation0]]
  $region38: #{tpu_custom_call.1} parent=0
    _
  %s9 = ssub.s32 1, %s7
  %s10 = scalar_select 0, %s9, %s7
  $region1: #{tpu_custom_call.1} parent=0
    #allocation2 [shape = 'u8[32768]{0}', space=vmem, size = 0x8000, scoped, tag = 'input window, operand 2, single buffered']
    #allocation3 [shape = 's32[1]{0}', space=sflag, size = 0x4, scoped, tag = 'scoped memory for tpu_custom_call.1']
    #allocation4 [shape = 's32[1]{0}', space=sflag, size = 0x4, scoped, tag = 'scoped memory for tpu_custom_call.1']
    #allocation5 [shape = 'u8[8192]{0}', space=vmem, size = 0x2000, scoped, tag = 'output window, operand 0, single buffered']
    %11 = vsyncpa [#allocation3], 0
    %12 = vsyncpa [#allocation4], 0
    // Predicated region
    $region2: #{tpu_custom_call.1} parent=1 // pred_check
      _
    $region3: #{tpu_custom_call.1} parent=1 // pred_check_branch
      %14 = sbr.rel (0) target = $region5
    $region4: #{tpu_custom_call.1} parent=1 // pred_region
      _
    $region5: #{tpu_custom_call.1} parent=1 // pred_fallthru
      _
    // Predicated region
    $region6: #{tpu_custom_call.1} parent=1 // pred_check
      _
    $region7: #{tpu_custom_call.1} parent=1 // pred_check_branch
      %16 = sbr.rel (0) target = $region9
    $region8: #{tpu_custom_call.1} parent=1 // pred_region
      _
    $region9: #{tpu_custom_call.1} parent=1 // pred_fallthru
      _
    // Predicated region
    $region10: #{tpu_custom_call.1} parent=1 // pred_check
      _
    $region11: #{tpu_custom_call.1} parent=1 // pred_check_branch
      %18 = sbr.rel (0) target = $region13
    $region12: #{tpu_custom_call.1} parent=1 // pred_region
      %s20 = ssub.s32 1024, 1024
      %21 = vsyncadd [#allocation3], %s20
      %s22 = sshll.u32 [#allocation2], 4
      %s23 = int_to_ptr.vmem [resolvable:$true] %s22
      %28 = dma.hbm_to_vmem [thread:$0]  %s2, 1024, %s23, [#allocation3], 128, 128, 8
    $region13: #{tpu_custom_call.1} parent=1 // pred_fallthru
      _
    // Predicated region
    $region14: #{tpu_custom_call.1} parent=1 // pred_check
      _
    $region15: #{tpu_custom_call.1} parent=1 // pred_check_branch
      %30 = sbr.rel (0) target = $region17
    $region16: #{tpu_custom_call.1} parent=1 // pred_region
      _
    $region17: #{tpu_custom_call.1} parent=1 // pred_fallthru
      _
    // Predicated region
    $region18: #{tpu_custom_call.1} parent=1 // pred_check
      _
    $region19: #{tpu_custom_call.1} parent=1 // pred_check_branch
      %32 = sbr.rel (0) target = $region21
    $region20: #{tpu_custom_call.1} parent=1 // pred_region
      _
    $region21: #{tpu_custom_call.1} parent=1 // pred_fallthru
      _
    // Predicated region
    $region22: #{tpu_custom_call.1} parent=1 // pred_check
      _
    $region23: #{tpu_custom_call.1} parent=1 // pred_check_branch
      %34 = sbr.rel (0) target = $region25
    $region24: #{tpu_custom_call.1} parent=1 // pred_region
      _
    $region25: #{tpu_custom_call.1} parent=1 // pred_fallthru
      _
    // Predicated region
    $region26: #{tpu_custom_call.1} parent=1 // pred_check
      _
    $region27: #{tpu_custom_call.1} parent=1 // pred_check_branch
      %36 = sbr.rel (0) target = $region29
    $region28: #{tpu_custom_call.1} parent=1 // pred_region
      %37 = dma.done [#allocation3], 1024
    $region29: #{tpu_custom_call.1} parent=1 // pred_fallthru
      _
    %v38 = vld [vmem:[%s0] sm:$0xff]
    %v39 = vld [vmem:[%s0 + $0x8] sm:$0xff]
    %v40 = vld [vmem:[%s1] sm:$0xff]
    %v41 = vld [vmem:[%s1 + $0x8] sm:$0xff]
    %v42 = vlaneseq
    %v43 = vand.u32 %v42, 127
    %44 = vset.pattern.permute.xlu0 0
    %45 = vperm.xlu0 %44, %v38
    %v46 = vpop.permute.xlu0 %45
    %47 = vset.pattern.permute.xlu0 0
    %48 = vperm.xlu0 %47, %v39
    %v49 = vpop.permute.xlu0 %48
    %vm50 = vcmp.eq.s32.totalorder %v43, %v46
    %vm51 = vcmp.eq.s32.totalorder %v43, %v49
    %v52 = vsel %vm50, 1, 0
    %v53 = vsel %vm51, 1, 0
    %v54 = vcvt.s32.f32 %v52
    %v55 = vcvt.s32.f32 %v53
    %56 = vset.pattern.permute.xlu0 0
    %57 = vperm.xlu0 %56, %v40
    %v58 = vpop.permute.xlu0 %57
    %59 = vset.pattern.permute.xlu0 0
    %60 = vperm.xlu0 %59, %v41
    %v61 = vpop.permute.xlu0 %60
    %vm62 = vcmp.eq.s32.totalorder %v43, %v58
    %vm63 = vcmp.eq.s32.totalorder %v43, %v61
    %v64 = vsel %vm62, 1, 0
    %v65 = vsel %vm63, 1, 0
    %v66 = vcvt.s32.f32 %v64
    %v67 = vcvt.s32.f32 %v65
    %v68 = vld [vmem:[#allocation2] sm:$0xff]
    %v69 = vld [vmem:[#allocation2 + $0x8] sm:$0xff]
    %v70 = vld [vmem:[#allocation2 + $0x10] sm:$0xff]
    %v71 = vld [vmem:[#allocation2 + $0x18] sm:$0xff]
    %v72 = vld [vmem:[#allocation2 + $0x20] sm:$0xff]
    %v73 = vld [vmem:[#allocation2 + $0x28] sm:$0xff]
    %v74 = vld [vmem:[#allocation2 + $0x30] sm:$0xff]
    %v75 = vld [vmem:[#allocation2 + $0x38] sm:$0xff]
    %v76 = vld [vmem:[%s3] sm:$0xff]
    %v77 = vld [vmem:[%s3 + $0x8] sm:$0xff]
    %vm78 = vcmask 130048
    %v80 = vsel %vm78, %v66, 0
    %v83 = vsel %vm78, %v67, 0
    %85 = vmatprep.subr.mxu0 0.0
    %86 = vmatpush1.msra.mxu0 %v76
    %87 = vmatprep.subr.mxu0 0.0
    %88 = vmatpush1.msra.mxu0 %v77
    %89 = vmatprep.subr.mxu0 0.0
    %90 = vmatpush1.msra.mxu0 0.0
    %91 = vmatprep.subr.mxu0 0.0
    %92 = vmatpush1.msra.mxu0 0.0
    %93 = vmatprep.subr.mxu0 0.0
    %94 = vmatpush1.msra.mxu0 0.0
    %95 = vmatprep.subr.mxu0 0.0
    %96 = vmatpush1.msra.mxu0 0.0
    %97 = vmatprep.subr.mxu0 0.0
    %98 = vmatpush1.msra.mxu0 0.0
    %99 = vmatprep.subr.mxu0 0.0
    %100 = vmatpush1.msra.mxu0 0.0
    %101 = vmatprep.subr.mxu0 0.0
    %102 = vmatpush1.msra.mxu0 0.0
    %103 = vmatprep.subr.mxu0 0.0
    %104 = vmatpush1.msra.mxu0 0.0
    %105 = vmatprep.subr.mxu0 0.0
    %106 = vmatpush1.msra.mxu0 0.0
    %107 = vmatprep.subr.mxu0 0.0
    %108 = vmatpush1.msra.mxu0 0.0
    %109 = vmatprep.subr.mxu0 0.0
    %110 = vmatpush1.msra.mxu0 0.0
    %111 = vmatprep.subr.mxu0 0.0
    %112 = vmatpush1.msra.mxu0 0.0
    %113 = vmatprep.subr.mxu0 0.0
    %114 = vmatpush1.msra.mxu0 0.0
    %115 = vmatprep.subr.mxu0 0.0
    %116 = vmatpush1.msra.mxu0 0.0
    %117 = vmatprep.subr.mxu0 0.0
    %118 = vmatpush1.msra.mxu0 0.0
    %119 = vmatprep.subr.mxu0 0.0
    %120 = vmatpush1.msra.mxu0 0.0
    %121 = vmatprep.subr.mxu0 0.0
    %122 = vmatpush1.msra.mxu0 0.0
    %123 = vmatprep.subr.mxu0 0.0
    %124 = vmatpush1.msra.mxu0 0.0
    %125 = vmatprep.subr.mxu0 0.0
    %126 = vmatpush1.msra.mxu0 0.0
    %127 = vmatprep.subr.mxu0 0.0
    %128 = vmatpush1.msra.mxu0 0.0
    %129 = vmatprep.subr.mxu0 0.0
    %130 = vmatpush1.msra.mxu0 0.0
    %131 = vmatprep.subr.mxu0 0.0
    %132 = vmatpush1.msra.mxu0 0.0
    %133 = vmatprep.subr.mxu0 0.0
    %134 = vmatpush1.msra.mxu0 0.0
    %135 = vmatprep.subr.mxu0 0.0
    %136 = vmatpush1.msra.mxu0 0.0
    %137 = vmatprep.subr.mxu0 0.0
    %138 = vmatpush1.msra.mxu0 0.0
    %139 = vmatprep.subr.mxu0 0.0
    %140 = vmatpush1.msra.mxu0 0.0
    %141 = vmatprep.subr.mxu0 0.0
    %142 = vmatpush1.msra.mxu0 0.0
    %143 = vmatprep.subr.mxu0 0.0
    %144 = vmatpush1.msra.mxu0 0.0
    %145 = vmatprep.subr.mxu0 0.0
    %146 = vmatpush1.msra.mxu0 0.0
    %147 = vmatprep.subr.mxu0 0.0
    %148 = vmatpush1.msra.mxu0 0.0
    %149 = vmatprep.mubr.f32.mxu0 0.0
    %150 = vmatmul.mubr.f32.gmra.mrb[0].mxu0 %v80
    %v151 = vpop.f32.mrb[0].mxu0
    %v152 = vadd.f32 0.0, %v151
    %v153 = vpop.f32.mrb[0].mxu0
    %154 = vmatprep.mubr.f32.mxu0 0.0
    %155 = vmatmul.mubr.f32.gmra.mrb[0].mxu0 %v83
    %v156 = vpop.f32.mrb[0].mxu0
    %v157 = vadd.f32 0.0, %v156
    %v158 = vpop.f32.mrb[0].mxu0
    %159 = vdwg.mxu0
    %vm160 = vcmask 523264
    %v162 = vsel %vm160, %v54, 0
    %v165 = vsel %vm160, %v55, 0
    %167 = vmatprep.subr.mxu0 0.0
    %168 = vmatpush1.msra.mxu0 %v68
    %169 = vmatprep.subr.mxu0 0.0
    %170 = vmatpush1.msra.mxu0 %v69
    %171 = vmatprep.subr.mxu0 0.0
    %172 = vmatpush1.msra.mxu0 %v70
    %173 = vmatprep.subr.mxu0 0.0
    %174 = vmatpush1.msra.mxu0 %v71
    %175 = vmatprep.subr.mxu0 0.0
    %176 = vmatpush1.msra.mxu0 %v72
    %177 = vmatprep.subr.mxu0 0.0
    %178 = vmatpush1.msra.mxu0 %v73
    %179 = vmatprep.subr.mxu0 0.0
    %180 = vmatpush1.msra.mxu0 %v74
    %181 = vmatprep.subr.mxu0 0.0
    %182 = vmatpush1.msra.mxu0 %v75
    %183 = vmatprep.subr.mxu0 0.0
    %184 = vmatpush1.msra.mxu0 0.0
    %185 = vmatprep.subr.mxu0 0.0
    %186 = vmatpush1.msra.mxu0 0.0
    %187 = vmatprep.subr.mxu0 0.0
    %188 = vmatpush1.msra.mxu0 0.0
    %189 = vmatprep.subr.mxu0 0.0
    %190 = vmatpush1.msra.mxu0 0.0
    %191 = vmatprep.subr.mxu0 0.0
    %192 = vmatpush1.msra.mxu0 0.0
    %193 = vmatprep.subr.mxu0 0.0
    %194 = vmatpush1.msra.mxu0 0.0
    %195 = vmatprep.subr.mxu0 0.0
    %196 = vmatpush1.msra.mxu0 0.0
    %197 = vmatprep.subr.mxu0 0.0
    %198 = vmatpush1.msra.mxu0 0.0
    %199 = vmatprep.subr.mxu0 0.0
    %200 = vmatpush1.msra.mxu0 0.0
    %201 = vmatprep.subr.mxu0 0.0
    %202 = vmatpush1.msra.mxu0 0.0
    %203 = vmatprep.subr.mxu0 0.0
    %204 = vmatpush1.msra.mxu0 0.0
    %205 = vmatprep.subr.mxu0 0.0
    %206 = vmatpush1.msra.mxu0 0.0
    %207 = vmatprep.subr.mxu0 0.0
    %208 = vmatpush1.msra.mxu0 0.0
    %209 = vmatprep.subr.mxu0 0.0
    %210 = vmatpush1.msra.mxu0 0.0
    %211 = vmatprep.subr.mxu0 0.0
    %212 = vmatpush1.msra.mxu0 0.0
    %213 = vmatprep.subr.mxu0 0.0
    %214 = vmatpush1.msra.mxu0 0.0
    %215 = vmatprep.subr.mxu0 0.0
    %216 = vmatpush1.msra.mxu0 0.0
    %217 = vmatprep.subr.mxu0 0.0
    %218 = vmatpush1.msra.mxu0 0.0
    %219 = vmatprep.subr.mxu0 0.0
    %220 = vmatpush1.msra.mxu0 0.0
    %221 = vmatprep.subr.mxu0 0.0
    %222 = vmatpush1.msra.mxu0 0.0
    %223 = vmatprep.subr.mxu0 0.0
    %224 = vmatpush1.msra.mxu0 0.0
    %225 = vmatprep.subr.mxu0 0.0
    %226 = vmatpush1.msra.mxu0 0.0
    %227 = vmatprep.subr.mxu0 0.0
    %228 = vmatpush1.msra.mxu0 0.0
    %229 = vmatprep.subr.mxu0 0.0
    %230 = vmatpush1.msra.mxu0 0.0
    %231 = vmatprep.mubr.f32.mxu0 0.0
    %232 = vmatmul.mubr.f32.gmra.mrb[0].mxu0 %v162
    %v233 = vpop.f32.mrb[0].mxu0
    %v234 = vadd.f32 %v152, %v233
    %v235 = vpop.f32.mrb[0].mxu0
    %236 = vmatprep.mubr.f32.mxu0 0.0
    %237 = vmatmul.mubr.f32.gmra.mrb[0].mxu0 %v165
    %v238 = vpop.f32.mrb[0].mxu0
    %v239 = vadd.f32 %v157, %v238
    %v240 = vpop.f32.mrb[0].mxu0
    %241 = vdwg.mxu0
    %242 = vadd.xlane.f32.xlu0 %v234
    %v243 = vpop.xlane.xlu0 %242
    %244 = vadd.xlane.f32.xlu0 %v239
    %v245 = vpop.xlane.xlu0 %244
    %v246 = vrcp.pop 128.0
    %v247 = vmul.f32 %v243, %v246
    %v248 = vmul.f32 %v245, %v246
    %v249 = vsub.f32 %v234, %v247
    %v250 = vsub.f32 %v239, %v248
    %v251 = vmul.f32 %v249, %v249
    %v252 = vmul.f32 %v250, %v250
    %253 = vadd.xlane.f32.xlu0 %v251
    %v254 = vpop.xlane.xlu0 %253
    %255 = vadd.xlane.f32.xlu0 %v252
    %v256 = vpop.xlane.xlu0 %255
    %v257 = vmul.f32 %v254, %v246
    %v258 = vmul.f32 %v256, %v246
    %v259 = vadd.f32 %v257, 1e-12
    %v260 = vadd.f32 %v258, 1e-12
    %v261 = vrsqrt.pop %v259
    %v262 = vrsqrt.pop %v260
    %v263 = vmul.f32 %v249, %v261
    %v264 = vmul.f32 %v250, %v262
    %v265 = vld [vmem:[%s4] sm:$0x1]
    %v267 = vlaneseq
    %v268 = vshrl.u32 %v267, 7
    %v269 = vsub.s32 0, %v268
    %v270 = vrot.slane %v265, %v269
    %v272 = vmul.f32 %v270, %v263
    %v273 = vmul.f32 %v270, %v264
    %v274 = vld [vmem:[%s5] sm:$0x1]
    %v276 = vlaneseq
    %v277 = vshrl.u32 %v276, 7
    %v278 = vsub.s32 0, %v277
    %v279 = vrot.slane %v274, %v278
    %v281 = vadd.f32 %v272, %v279
    %v282 = vadd.f32 %v273, %v279
    %283 = vst [vmem:[#allocation5] sm:$0xff] %v281
    %284 = vst [vmem:[#allocation5 + $0x8] sm:$0xff] %v282
    // Predicated region
    $region30: #{tpu_custom_call.1} parent=1 // pred_check
      _
    $region31: #{tpu_custom_call.1} parent=1 // pred_check_branch
      %286 = sbr.rel (0) target = $region33
    $region32: #{tpu_custom_call.1} parent=1 // pred_region
      %s288 = ssub.s32 256, 256
      %289 = vsyncadd [#allocation4], %s288
      %s290 = sshll.u32 [#allocation5], 4
      %s291 = int_to_ptr.vmem [resolvable:$true] %s290
      %296 = dma.vmem_to_hbm [thread:$0]  %s291, 256, %s6, [#allocation4], 128, 128, 8
    $region33: #{tpu_custom_call.1} parent=1 // pred_fallthru
      _
    // Predicated region
    $region34: #{tpu_custom_call.1} parent=1 // pred_check
      _
    $region35: #{tpu_custom_call.1} parent=1 // pred_check_branch
      %298 = sbr.rel (0) target = $region37
    $region36: #{tpu_custom_call.1} parent=1 // pred_region
      %299 = dma.done [#allocation4], 256
    $region37: #{tpu_custom_call.1} parent=1 // pred_fallthru
      _
    %300 = vsyncpa [#allocation3], 1
    %301 = vsyncpa [#allocation4], 1

</llo_original>
